<compile_context>
chip_gen: v5e
topology: v5e:2x2
jax: 0.10.0
libtpu: 0.0.40
codegen_flags: <defaults>
</compile_context>

<pallas_src>
import functools

import jax
import jax.numpy as jnp
from jax.experimental import pallas as pl
from jax.experimental.pallas import tpu as pltpu


def _cdiv(a, b):
    return (a + b - 1) // b


def _combined_loss_kernel(z1_ref, y1_ref, tgt_ref, z2_ref, counts_ref, cpow_ref,
                          out_ref, *, batch, tile_rows, blocks_per_core, eps):
    core = pl.program_id(0)
    step = pl.program_id(1)

    @pl.when(step == 0)
    def _init():
        out_ref[...] = jnp.zeros_like(out_ref)

    tb, c = z2_ref.shape

    # Global row ids for this tile (from the *unclamped* block index); rows past
    # the real batch (partial / clamped tail blocks) are masked out below.
    blk = core * blocks_per_core + step
    row_ids = blk * tile_rows + jax.lax.broadcasted_iota(jnp.int32, (tb, 1), 0)
    row_valid = row_ids < batch                                          # [TB,1] bool

    # ----------------- loss 1: BCE with logits (stable form) -----------------
    z1 = z1_ref[...].astype(jnp.float32)                                 # [TB,1]
    y1 = y1_ref[...].astype(jnp.float32)
    bce = (jnp.maximum(z1, 0.0) - z1 * y1
           + jnp.log(1.0 + jnp.exp(-jnp.abs(z1))))                       # [TB,1]

    # ----------------- loss 2: seesaw loss with logits ------------------------
    z2 = z2_ref[...].astype(jnp.float32)                                 # [TB,C]
    counts = counts_ref[...]                                             # [1,C]
    cpow = cpow_ref[...]                                                 # [1,C] counts**p
    tgt = tgt_ref[...]                                                   # [TB,1] int32

    lane = jax.lax.broadcasted_iota(jnp.int32, (tb, c), 1)
    is_gt = lane == tgt                                                  # [TB,C] bool

    m = jnp.max(z2, axis=-1, keepdims=True)                              # [TB,1]
    e = jnp.exp(z2 - m)                                                  # [TB,C] (<= 1)

    num = jnp.sum(jnp.where(is_gt, e, 0.0), axis=-1, keepdims=True)       # exp(z_gt-m)
    cnt_gt = jnp.sum(jnp.where(is_gt, counts, 0.0), axis=-1, keepdims=True)
    cpow_gt = jnp.sum(jnp.where(is_gt, cpow, 0.0), axis=-1, keepdims=True)

    # S[gt, j] = (counts[j] / counts[gt])**p if counts[gt] > counts[j] else 1
    # pow precomputed wrapper-side: only a per-row reciprocal + one mul here.
    scale = cpow * (1.0 / cpow_gt)                                        # [TB,C]
    denom = jnp.sum(jnp.where(cnt_gt > counts, scale * e, e),
                    axis=-1, keepdims=True)                               # [TB,1]
    sigma = num / (denom + eps)
    seesaw = -jnp.log(sigma + eps)                                        # [TB,1]

    # NaN-safe masking of ragged / clamped rows (select, not multiply).
    per_row = jnp.where(row_valid, bce + seesaw, 0.0)                     # [TB,1]
    tile_sum = jnp.sum(per_row, axis=0, keepdims=True)                    # [1,1]
    out_ref[...] += tile_sum                                              # lane-broadcast


def prep_class_counts(class_counts, p=0.8):
    """One-time parameter prep (hoisted out of the per-step loss call)."""
    counts = jnp.asarray(class_counts, jnp.float32).reshape(1, -1)
    return counts, counts ** p


def _pick_config(b, tile_rows, vmem_limit_bytes, num_cores):
    kind = ""
    try:
        kind = jax.devices()[0].device_kind.lower()
    except Exception:
        pass
    is_v7 = "v7" in kind
    if tile_rows is None:
        tile_rows = 256 if is_v7 else 512          # v7x: 64 MiB VMEM -> smaller tiles
    if vmem_limit_bytes is None:
        vmem_limit_bytes = (44 if is_v7 else 64) * 1024 * 1024
    if num_cores is None:
        num_cores = 2 if is_v7 else 1              # v7x: shard batch over 2 TCs
    if b <= tile_rows:
        tile_rows = b                              # full-dim block (exempt from /8 rule)
    nblocks = _cdiv(b, tile_rows)
    num_cores = max(1, min(num_cores, nblocks))
    return tile_rows, vmem_limit_bytes, num_cores, nblocks


def combined_loss(out1, out2, targets, counts, counts_pow, *, eps=1e-6,
                  tile_rows=None, vmem_limit_bytes=None, num_cores=None):
    """Pallas CombinedLoss: BCEWithLogits(out1, targets[:,1]) + Seesaw(out2, targets[:,0])."""
    b, c = out2.shape
    assert counts.shape == (1, c) and counts_pow.shape == (1, c)

    tile_rows, vmem_limit_bytes, num_cores, nblocks = _pick_config(
        b, tile_rows, vmem_limit_bytes, num_cores)
    bpc = _cdiv(nblocks, num_cores)

    z1 = out1.reshape(b, 1)                      # keep upstream dtype; cast in kernel
    y1 = targets[:, 1:2]                         # binary labels (cast in kernel)
    tgt = targets[:, 0:1].astype(jnp.int32)      # class indices

    needs_clamp = num_cores * bpc > nblocks

    def row_block(core, i):
        blk = core * bpc + i
        if needs_clamp:
            blk = jnp.minimum(blk, nblocks - 1)  # clamp over-hanging tail blocks
        return (blk, 0)

    kernel = functools.partial(_combined_loss_kernel, batch=b, tile_rows=tile_rows,
                               blocks_per_core=bpc, eps=eps)

    # One lane-dense (1,128) partial-sum block per core; summed in the wrapper.
    partials = pl.pallas_call(
        kernel,
        out_shape=jax.ShapeDtypeStruct((1, 128 * num_cores), jnp.float32),
        grid_spec=pltpu.PrefetchScalarGridSpec(
            num_scalar_prefetch=0,
            grid=(num_cores, bpc),
            in_specs=[
                pl.BlockSpec((tile_rows, 1), row_block),        # binary logits
                pl.BlockSpec((tile_rows, 1), row_block),        # binary targets
                pl.BlockSpec((tile_rows, 1), row_block),        # class targets
                pl.BlockSpec((tile_rows, c), row_block),        # class logits (streamed, unpadded)
                pl.BlockSpec((1, c), lambda core, i: (0, 0)),   # class counts (resident)
                pl.BlockSpec((1, c), lambda core, i: (0, 0)),   # counts**p (resident)
            ],
            out_specs=pl.BlockSpec((1, 128), lambda core, i: (0, core)),
        ),
        compiler_params=pltpu.CompilerParams(
            dimension_semantics=("parallel", "arbitrary"),
            vmem_limit_bytes=vmem_limit_bytes,
        ),
    )(z1, y1, tgt, out2, counts, counts_pow)

    return jnp.sum(partials[0, ::128]) / b


def reference_combined_loss(out1, out2, targets, class_counts, p=0.8, eps=1e-6):
    """Pure-JAX reference mirroring the PyTorch CombinedLoss semantics."""
    z1 = out1.reshape(-1).astype(jnp.float32)
    y1 = targets[:, 1].astype(jnp.float32)
    bce = jnp.mean(jnp.maximum(z1, 0.0) - z1 * y1
                   + jnp.log(1.0 + jnp.exp(-jnp.abs(z1))))

    z2 = out2.astype(jnp.float32)
    tgt = targets[:, 0].astype(jnp.int32)
    c = z2.shape[1]
    counts = jnp.asarray(class_counts, jnp.float32)
    onehot = jax.nn.one_hot(tgt, c, dtype=jnp.float32)
    s = jnp.where(counts[:, None] > counts[None, :],
                  (counts[None, :] / counts[:, None]) ** p, 1.0)    # [C, C]
    s_rows = s[tgt]                                                 # [B, C]
    m = jnp.max(z2, axis=-1, keepdims=True)
    e = jnp.exp(z2 - m)
    num = jnp.sum(onehot * e, axis=-1)
    denom = jnp.sum((1.0 - onehot) * s_rows * e, axis=-1) + num
    sigma = num / (denom + eps)
    seesaw = jnp.mean(-jnp.log(sigma + eps))
    return bce + seesaw


if __name__ == "__main__":
    B = 8
    NUM_CLASSES = 1784          # hard-wired in the PyTorch module (num_labels)

    key = jax.random.PRNGKey(0)
    k1, k2, k3, k4, k5 = jax.random.split(key, 5)

    out1 = jax.random.normal(k1, (B, 1), jnp.float32)                  # outputs[0]
    out2 = jax.random.normal(k2, (B, NUM_CLASSES), jnp.float32)        # outputs[1]
    tgt_cls = jax.random.randint(k3, (B,), 0, NUM_CLASSES, jnp.int32)  # targets[:,0]
    tgt_bin = jax.random.randint(k4, (B,), 0, 2, jnp.int32)            # targets[:,1]
    targets = jnp.stack([tgt_cls, tgt_bin], axis=1)

    # synthetic deterministic per-class counts for the seesaw term
    class_counts = jax.random.randint(k5, (NUM_CLASSES,), 1, 1000).astype(jnp.float32)
    counts, counts_pow = prep_class_counts(class_counts, p=0.8)   # one-time prep (hoisted)

    loss_fn = jax.jit(functools.partial(combined_loss, eps=1e-6))
    loss = loss_fn(out1, out2, targets, counts, counts_pow)
    jax.block_until_ready(loss)

    ref = reference_combined_loss(out1, out2, targets, class_counts)
    assert loss.shape == ()
    assert jnp.allclose(loss, ref, atol=1e-4, rtol=1e-4), (loss, ref)

    print("KERNEL_OK")
</pallas_src>

<mosaic_0001>
module attributes {stable_mosaic.version = 11 : i64} {
  func.func @_combined_loss_kernel(%arg0: i32, %arg1: i32, %arg2: memref<8x1xf32, #tpu.memory_space<vmem>>, %arg3: memref<8x1xi32, #tpu.memory_space<vmem>>, %arg4: memref<8x1xi32, #tpu.memory_space<vmem>>, %arg5: memref<8x1784xf32, #tpu.memory_space<vmem>>, %arg6: memref<1x1784xf32, #tpu.memory_space<vmem>>, %arg7: memref<1x1784xf32, #tpu.memory_space<vmem>>, %arg8: memref<1x128xf32, #tpu.memory_space<vmem>>) attributes {dimension_semantics = [#tpu.dimension_semantics<parallel>, #tpu.dimension_semantics<arbitrary>], iteration_bounds = array<i64: 1, 1>, scalar_prefetch = 0 : i64, scratch_operands = 0 : i64, tpu.core_type = #tpu.core_type<tc>, window_params = [{transform_indices = @transform_0, window_bounds = array<i64: 8, 1>}, {transform_indices = @transform_1, window_bounds = array<i64: 8, 1>}, {transform_indices = @transform_2, window_bounds = array<i64: 8, 1>}, {transform_indices = @transform_3, window_bounds = array<i64: 8, 1784>}, {pipeline_mode = #tpu.pipeline_mode<synchronous>, transform_indices = @transform_4, window_bounds = array<i64: 1, 1784>}, {pipeline_mode = #tpu.pipeline_mode<synchronous>, transform_indices = @transform_5, window_bounds = array<i64: 1, 1784>}, {transform_indices = @transform_6, window_bounds = array<i64: 1, 128>}]} {
    %c0_i32 = arith.constant 0 : i32
    %0 = arith.cmpi eq, %arg1, %c0_i32 : i32
    %1 = arith.extui %0 : i1 to i32
    %c0_i32_0 = arith.constant 0 : i32
    %2 = arith.cmpi ne, %1, %c0_i32_0 : i32
    scf.if %2 {
      %cst_33 = arith.constant 0.000000e+00 : f32
      %83 = vector.broadcast %cst_33 : f32 to vector<1x128xf32>
      %c0_34 = arith.constant 0 : index
      %c0_35 = arith.constant 0 : index
      %84 = vector.load %arg8[%c0_34, %c0_35] : memref<1x128xf32, #tpu.memory_space<vmem>>, vector<1x128xf32>
      tpu.vector_store %arg8[%c0_34, %c0_35], %83 {strides = array<i32>} : memref<1x128xf32, #tpu.memory_space<vmem>>, vector<1x128xf32>,
    } else {
    }
    %c1_i32 = arith.constant 1 : i32
    %3 = arith.muli %arg0, %c1_i32 : i32
    %4 = arith.addi %3, %arg1 : i32
    %c8_i32 = arith.constant 8 : i32
    %5 = arith.muli %4, %c8_i32 : i32
    %6 = tpu.iota {dimensions = array<i32: 0>} : vector<8x1xi32>
    %7 = vector.broadcast %5 : i32 to vector<8x1xi32>
    %8 = arith.addi %7, %6 : vector<8x1xi32>
    %c8_i32_1 = arith.constant 8 : i32
    %9 = vector.broadcast %c8_i32_1 : i32 to vector<8x1xi32>
    %10 = arith.cmpi slt, %8, %9 : vector<8x1xi32>
    %c0 = arith.constant 0 : index
    %c0_2 = arith.constant 0 : index
    %11 = vector.load %arg2[%c0, %c0_2] : memref<8x1xf32, #tpu.memory_space<vmem>>, vector<8x1xf32>
    %c0_3 = arith.constant 0 : index
    %c0_4 = arith.constant 0 : index
    %12 = vector.load %arg3[%c0_3, %c0_4] : memref<8x1xi32, #tpu.memory_space<vmem>>, vector<8x1xi32>
    %13 = arith.sitofp %12 : vector<8x1xi32> to vector<8x1xf32>
    %cst = arith.constant 0.000000e+00 : f32
    %14 = vector.broadcast %cst : f32 to vector<8x1xf32>
    %15 = arith.maximumf %11, %14 : vector<8x1xf32>
    %16 = arith.mulf %11, %13 : vector<8x1xf32>
    %17 = arith.subf %15, %16 : vector<8x1xf32>
    %18 = math.absf %11 : vector<8x1xf32>
    %cst_5 = arith.constant 0.000000e+00 : f32
    %19 = vector.broadcast %cst_5 : f32 to vector<8x1xf32>
    %20 = arith.subf %19, %18 : vector<8x1xf32>
    %21 = math.exp %20 : vector<8x1xf32>
    %cst_6 = arith.constant 1.000000e+00 : f32
    %22 = vector.broadcast %cst_6 : f32 to vector<8x1xf32>
    %23 = arith.addf %22, %21 : vector<8x1xf32>
    %24 = math.log %23 : vector<8x1xf32>
    %25 = arith.addf %17, %24 : vector<8x1xf32>
    %c0_7 = arith.constant 0 : index
    %c0_8 = arith.constant 0 : index
    %26 = vector.load %arg5[%c0_7, %c0_8] : memref<8x1784xf32, #tpu.memory_space<vmem>>, vector<8x1784xf32>
    %c0_9 = arith.constant 0 : index
    %c0_10 = arith.constant 0 : index
    %27 = vector.load %arg6[%c0_9, %c0_10] : memref<1x1784xf32, #tpu.memory_space<vmem>>, vector<1x1784xf32>
    %c0_11 = arith.constant 0 : index
    %c0_12 = arith.constant 0 : index
    %28 = vector.load %arg7[%c0_11, %c0_12] : memref<1x1784xf32, #tpu.memory_space<vmem>>, vector<1x1784xf32>
    %c0_13 = arith.constant 0 : index
    %c0_14 = arith.constant 0 : index
    %29 = vector.load %arg4[%c0_13, %c0_14] : memref<8x1xi32, #tpu.memory_space<vmem>>, vector<8x1xi32>
    %30 = tpu.iota {dimensions = array<i32: 1>} : vector<8x1784xi32>
    %31 = vector.broadcast %29 : vector<8x1xi32> to vector<8x1784xi32>
    %32 = arith.cmpi eq, %30, %31 : vector<8x1784xi32>
    %cst_15 = arith.constant dense<0xFF800000> : vector<8xf32>
    %33 = vector.multi_reduction <maximumf>, %26, %cst_15 [1] : vector<8x1784xf32> to vector<8xf32>
    %34 = vector.shape_cast %33 : vector<8xf32> to vector<8x1xf32>
    %35 = vector.broadcast %34 : vector<8x1xf32> to vector<8x1784xf32>
    %36 = arith.subf %26, %35 : vector<8x1784xf32>
    %37 = math.exp %36 : vector<8x1784xf32>
    %cst_16 = arith.constant 0.000000e+00 : f32
    %38 = vector.broadcast %cst_16 : f32 to vector<8x1784xf32>
    %39 = arith.select %32, %37, %38 : vector<8x1784xi1>, vector<8x1784xf32>
    %cst_17 = arith.constant dense<0.000000e+00> : vector<8xf32>
    %40 = vector.multi_reduction <add>, %39, %cst_17 [1] : vector<8x1784xf32> to vector<8xf32>
    %41 = vector.shape_cast %40 : vector<8xf32> to vector<8x1xf32>
    %cst_18 = arith.constant 0.000000e+00 : f32
    %42 = vector.shape_cast %27 : vector<1x1784xf32> to vector<1x1784xf32>
    %43 = vector.broadcast %42 : vector<1x1784xf32> to vector<8x1784xf32>
    %44 = vector.broadcast %cst_18 : f32 to vector<8x1784xf32>
    %45 = arith.select %32, %43, %44 : vector<8x1784xi1>, vector<8x1784xf32>
    %cst_19 = arith.constant dense<0.000000e+00> : vector<8xf32>
    %46 = vector.multi_reduction <add>, %45, %cst_19 [1] : vector<8x1784xf32> to vector<8xf32>
    %47 = vector.shape_cast %46 : vector<8xf32> to vector<8x1xf32>
    %cst_20 = arith.constant 0.000000e+00 : f32
    %48 = vector.shape_cast %28 : vector<1x1784xf32> to vector<1x1784xf32>
    %49 = vector.broadcast %48 : vector<1x1784xf32> to vector<8x1784xf32>
    %50 = vector.broadcast %cst_20 : f32 to vector<8x1784xf32>
    %51 = arith.select %32, %49, %50 : vector<8x1784xi1>, vector<8x1784xf32>
    %cst_21 = arith.constant dense<0.000000e+00> : vector<8xf32>
    %52 = vector.multi_reduction <add>, %51, %cst_21 [1] : vector<8x1784xf32> to vector<8xf32>
    %53 = vector.shape_cast %52 : vector<8xf32> to vector<8x1xf32>
    %cst_22 = arith.constant 1.000000e+00 : f32
    %54 = vector.broadcast %cst_22 : f32 to vector<8x1xf32>
    %55 = arith.divf %54, %53 : vector<8x1xf32>
    %56 = vector.broadcast %28 : vector<1x1784xf32> to vector<8x1784xf32>
    %57 = vector.broadcast %55 : vector<8x1xf32> to vector<8x1784xf32>
    %58 = arith.mulf %56, %57 : vector<8x1784xf32>
    %59 = vector.broadcast %47 : vector<8x1xf32> to vector<8x1784xf32>
    %60 = vector.broadcast %27 : vector<1x1784xf32> to vector<8x1784xf32>
    %61 = arith.cmpf ogt, %59, %60 : vector<8x1784xf32>
    %62 = arith.mulf %58, %37 : vector<8x1784xf32>
    %63 = arith.select %61, %62, %37 : vector<8x1784xi1>, vector<8x1784xf32>
    %cst_23 = arith.constant dense<0.000000e+00> : vector<8xf32>
    %64 = vector.multi_reduction <add>, %63, %cst_23 [1] : vector<8x1784xf32> to vector<8xf32>
    %65 = vector.shape_cast %64 : vector<8xf32> to vector<8x1xf32>
    %cst_24 = arith.constant 9.99999997E-7 : f32
    %66 = vector.broadcast %cst_24 : f32 to vector<8x1xf32>
    %67 = arith.addf %65, %66 : vector<8x1xf32>
    %68 = arith.divf %41, %67 : vector<8x1xf32>
    %cst_25 = arith.constant 9.99999997E-7 : f32
    %69 = vector.broadcast %cst_25 : f32 to vector<8x1xf32>
    %70 = arith.addf %68, %69 : vector<8x1xf32>
    %71 = math.log %70 : vector<8x1xf32>
    %cst_26 = arith.constant 0.000000e+00 : f32
    %72 = vector.broadcast %cst_26 : f32 to vector<8x1xf32>
    %73 = arith.subf %72, %71 : vector<8x1xf32>
    %74 = arith.addf %25, %73 : vector<8x1xf32>
    %cst_27 = arith.constant 0.000000e+00 : f32
    %75 = vector.broadcast %cst_27 : f32 to vector<8x1xf32>
    %76 = arith.select %10, %74, %75 : vector<8x1xi1>, vector<8x1xf32>
    %cst_28 = arith.constant dense<0.000000e+00> : vector<1xf32>
    %77 = vector.multi_reduction <add>, %76, %cst_28 [0] : vector<8x1xf32> to vector<1xf32>
    %78 = vector.shape_cast %77 : vector<1xf32> to vector<1x1xf32>
    %c0_29 = arith.constant 0 : index
    %c0_30 = arith.constant 0 : index
    %79 = vector.load %arg8[%c0_29, %c0_30] : memref<1x128xf32, #tpu.memory_space<vmem>>, vector<1x128xf32>
    %80 = vector.broadcast %78 : vector<1x1xf32> to vector<1x128xf32>
    %81 = arith.addf %79, %80 : vector<1x128xf32>
    %c0_31 = arith.constant 0 : index
    %c0_32 = arith.constant 0 : index
    %82 = vector.load %arg8[%c0_31, %c0_32] : memref<1x128xf32, #tpu.memory_space<vmem>>, vector<1x128xf32>
    tpu.vector_store %arg8[%c0_31, %c0_32], %81 {strides = array<i32>} : memref<1x128xf32, #tpu.memory_space<vmem>>, vector<1x128xf32>,
    return
  }
  func.func @transform_0(%arg0: i32, %arg1: i32) -> (i32, i32) {
    %c1_i32 = arith.constant 1 : i32
    %0 = arith.muli %arg0, %c1_i32 : i32
    %1 = arith.addi %0, %arg1 : i32
    %c0_i32 = arith.constant 0 : i32
    %c0_i32_0 = arith.constant 0 : i32
    return %1, %c0_i32 : i32, i32
  }
  func.func @transform_1(%arg0: i32, %arg1: i32) -> (i32, i32) {
    %c1_i32 = arith.constant 1 : i32
    %0 = arith.muli %arg0, %c1_i32 : i32
    %1 = arith.addi %0, %arg1 : i32
    %c0_i32 = arith.constant 0 : i32
    %c0_i32_0 = arith.constant 0 : i32
    return %1, %c0_i32 : i32, i32
  }
  func.func @transform_2(%arg0: i32, %arg1: i32) -> (i32, i32) {
    %c1_i32 = arith.constant 1 : i32
    %0 = arith.muli %arg0, %c1_i32 : i32
    %1 = arith.addi %0, %arg1 : i32
    %c0_i32 = arith.constant 0 : i32
    %c0_i32_0 = arith.constant 0 : i32
    return %1, %c0_i32 : i32, i32
  }
  func.func @transform_3(%arg0: i32, %arg1: i32) -> (i32, i32) {
    %c1_i32 = arith.constant 1 : i32
    %0 = arith.muli %arg0, %c1_i32 : i32
    %1 = arith.addi %0, %arg1 : i32
    %c0_i32 = arith.constant 0 : i32
    %c0_i32_0 = arith.constant 0 : i32
    return %1, %c0_i32 : i32, i32
  }
  func.func @transform_4(%arg0: i32, %arg1: i32) -> (i32, i32) {
    %c0_i32 = arith.constant 0 : i32
    %c0_i32_0 = arith.constant 0 : i32
    %c0_i32_1 = arith.constant 0 : i32
    return %c0_i32, %c0_i32_0 : i32, i32
  }
  func.func @transform_5(%arg0: i32, %arg1: i32) -> (i32, i32) {
    %c0_i32 = arith.constant 0 : i32
    %c0_i32_0 = arith.constant 0 : i32
    %c0_i32_1 = arith.constant 0 : i32
    return %c0_i32, %c0_i32_0 : i32, i32
  }
  func.func @transform_6(%arg0: i32, %arg1: i32) -> (i32, i32) {
    %c0_i32 = arith.constant 0 : i32
    %c0_i32_0 = arith.constant 0 : i32
    return %c0_i32, %arg0 : i32, i32
  }
}

</mosaic_0001>

<llo_original>
// kernel: combined_loss.1
$region0: #{combined_loss.1}
  #allocation0 [shape = 'u32[]', space=smem, size = 0x4, offset = 0x4, fixed_abs, tag = 'smem constant byte address 0x4 - core index']
  #allocation1 [shape = 'u32[72,128]{1,0:T(1,128)}', space=vmem, size = 0x9000, scoped, tag = 'internal scratch']
  %s0 = inlined_call_operand.vmem [shape: f32[8,1], index: 0, kind: input, shape index: {}]
  %s1 = inlined_call_operand.vmem [shape: s32[8,1], index: 1, kind: input, shape index: {}]
  %s2 = inlined_call_operand.vmem [shape: s32[8,1], index: 2, kind: input, shape index: {}]
  %s3 = inlined_call_operand.hbm [shape: f32[8,1784], index: 3, kind: input, shape index: {}]
  %s4 = inlined_call_operand.vmem [shape: f32[1,1784], index: 4, kind: input, shape index: {}]
  %s5 = inlined_call_operand.vmem [shape: f32[1,1784], index: 5, kind: input, shape index: {}]
  %s6 = inlined_call_operand.vmem [shape: f32[1,128], index: 6, kind: output, shape index: {}]
  %s7 = sld [smem:[#allocation0]]
  $region42: #{combined_loss.1} parent=0
    _
  %s9 = ssub.s32 1, %s7
  %s10 = scalar_select 0, %s9, %s7
  $region1: #{combined_loss.1} parent=0
    #allocation2 [shape = 'u8[57344]{0}', space=vmem, size = 0xe000, scoped, tag = 'input window, operand 3, single buffered']
    #allocation3 [shape = 's32[1]{0}', space=sflag, size = 0x4, scoped, tag = 'scoped memory for combined_loss.1']
    %11 = vsyncpa [#allocation3], 0
    // Predicated region
    $region2: #{combined_loss.1} parent=1 // pred_check
      _
    $region3: #{combined_loss.1} parent=1 // pred_check_branch
      %13 = sbr.rel (0) target = $region5
    $region4: #{combined_loss.1} parent=1 // pred_region
      %s14 = sadd.s32 0, 0
      %p15 = scmp.lt.s32.totalorder %s14, 0
      %s16 = scalar_select %p15, %s14, 0
      %s17 = smul.addr %s16, 8
      %s18 = scalar_lea.vmem %s0, %s17
      %s19 = sadd.s32 0, 0
    $region5: #{combined_loss.1} parent=1 // pred_fallthru
      _
    // Predicated region
    $region6: #{combined_loss.1} parent=1 // pred_check
      _
    $region7: #{combined_loss.1} parent=1 // pred_check_branch
      %21 = sbr.rel (0) target = $region9
    $region8: #{combined_loss.1} parent=1 // pred_region
      %s22 = sadd.s32 0, 0
      %p23 = scmp.lt.s32.totalorder %s22, 0
      %s24 = scalar_select %p23, %s22, 0
      %s25 = smul.addr %s24, 8
      %s26 = scalar_lea.vmem %s1, %s25
      %s27 = sadd.s32 0, 0
    $region9: #{combined_loss.1} parent=1 // pred_fallthru
      _
    // Predicated region
    $region10: #{combined_loss.1} parent=1 // pred_check
      _
    $region11: #{combined_loss.1} parent=1 // pred_check_branch
      %29 = sbr.rel (0) target = $region13
    $region12: #{combined_loss.1} parent=1 // pred_region
      %s30 = sadd.s32 0, 0
      %p31 = scmp.lt.s32.totalorder %s30, 0
      %s32 = scalar_select %p31, %s30, 0
      %s33 = smul.addr %s32, 8
      %s34 = scalar_lea.vmem %s2, %s33
      %s35 = sadd.s32 0, 0
    $region13: #{combined_loss.1} parent=1 // pred_fallthru
      _
    // Predicated region
    $region14: #{combined_loss.1} parent=1 // pred_check
      _
    $region15: #{combined_loss.1} parent=1 // pred_check_branch
      %37 = sbr.rel (0) target = $region17
    $region16: #{combined_loss.1} parent=1 // pred_region
      %s38 = sadd.s32 0, 0
      %40 = vsyncadd [#allocation3], 0
      %s41 = smul.addr %s38, 14
      %s42 = smul.addr %s41, 8
      %s43 = scalar_lea.hbm %s3, %s42
      %s45 = sshll.u32 %s43, 4
      %s46 = int_to_ptr.hbm [resolvable:$true] %s45
      %s47 = sshll.u32 [#allocation2], 4
      %s48 = int_to_ptr.vmem [resolvable:$true] %s47
      %50 = dma.hbm_to_vmem [thread:$0]  %s46, 1792, %s48, [#allocation3]
    $region17: #{combined_loss.1} parent=1 // pred_fallthru
      _
    // Predicated region
    $region18: #{combined_loss.1} parent=1 // pred_check
      _
    $region19: #{combined_loss.1} parent=1 // pred_check_branch
      %52 = sbr.rel (0) target = $region21
    $region20: #{combined_loss.1} parent=1 // pred_region
      _
    $region21: #{combined_loss.1} parent=1 // pred_fallthru
      _
    // Predicated region
    $region22: #{combined_loss.1} parent=1 // pred_check
      _
    $region23: #{combined_loss.1} parent=1 // pred_check_branch
      %54 = sbr.rel (0) target = $region25
    $region24: #{combined_loss.1} parent=1 // pred_region
      _
    $region25: #{combined_loss.1} parent=1 // pred_fallthru
      _
    // Predicated region
    $region26: #{combined_loss.1} parent=1 // pred_check
      _
    $region27: #{combined_loss.1} parent=1 // pred_check_branch
      %56 = sbr.rel (0) target = $region29
    $region28: #{combined_loss.1} parent=1 // pred_region
      %58 = dma.done [#allocation3], 1792
    $region29: #{combined_loss.1} parent=1 // pred_fallthru
      _
    %s59 = sadd.s32 0, 0
    %p60 = scmp.lt.s32.totalorder %s59, 0
    %s61 = scalar_select %p60, %s59, 0
    %s62 = smul.addr %s61, 8
    %s63 = scalar_lea.vmem %s0, %s62
    %s64 = sadd.s32 0, 0
    %p65 = scmp.lt.s32.totalorder %s64, 0
    %s66 = scalar_select %p65, %s64, 0
    %s67 = smul.addr %s66, 8
    %s68 = scalar_lea.vmem %s1, %s67
    %s69 = sadd.s32 0, 0
    %p70 = scmp.lt.s32.totalorder %s69, 0
    %s71 = scalar_select %p70, %s69, 0
    %s72 = smul.addr %s71, 8
    %s73 = scalar_lea.vmem %s2, %s72
    %s74 = sadd.s32 0, 0
    %p75 = scmp.lt.s32.totalorder %s74, 0
    %s76 = scalar_select %p75, %s74, 0
    %s77 = smul.addr %s76, 8
    %s78 = scalar_lea.vmem %s0, %s77
    %s79 = sadd.s32 0, 0
    %s80 = sadd.s32 0, 0
    %p81 = scmp.lt.s32.totalorder %s80, 0
    %s82 = scalar_select %p81, %s80, 0
    %s83 = smul.addr %s82, 8
    %s84 = scalar_lea.vmem %s1, %s83
    %s85 = sadd.s32 0, 0
    %s86 = sadd.s32 0, 0
    %p87 = scmp.lt.s32.totalorder %s86, 0
    %s88 = scalar_select %p87, %s86, 0
    %s89 = smul.addr %s88, 8
    %s90 = scalar_lea.vmem %s2, %s89
    %s91 = sadd.s32 0, 0
    %s92 = sadd.s32 0, 0
    %p93 = scmp.eq.s32.totalorder 0, 0
    // Predicated region
    $region30: #{combined_loss.1} parent=1 // pred_check
      %p94 = pneg %p93
    $region31: #{combined_loss.1} parent=1 // pred_check_branch
      %96 = sbr.rel (%p94) target = $region33
    $region32: #{combined_loss.1} parent=1 // pred_region
      %97 = vst [vmem:[%s6] sm:$0x1] 0.0
    $region33: #{combined_loss.1} parent=1 // pred_fallthru
      _
    %s98 = sadd.s32 0, 0
    %s99 = smul.u32 %s98, 8
    %v100 = vlaneseq
    %v101 = vshrl.u32 %v100, 7
    %v102 = vstv %s99
    %v103 = vadd.s32 %v102, %v101
    %vm104 = vcmp.lt.s32.totalorder %v103, 8
    %v105 = vld [vmem:[%s78] sm:$0xff]
    %v106 = vld [vmem:[%s84] sm:$0xff]
    %v107 = vcvt.s32.f32 %v106
    %v108 = vmax.f32 %v105, 0.0
    %v109 = vmul.f32 %v105, %v107
    %v110 = vsub.f32 %v108, %v109
    %v111 = vand.u32 2147483647, %v105
    %v112 = vsub.f32 0.0, %v111
    %v113 = vmul.f32 %v112, 1.442695
    %v114 = vpow.pop %v113
    %v115 = vadd.f32 %v114, 1.0
    %v116 = vlog2.pop %v115
    %v117 = vmul.f32 %v116, 0.6931472
    %v118 = vadd.f32 %v110, %v117
    %v119 = vld [vmem:[#allocation2] sm:$0xff]
    %v120 = vld [vmem:[#allocation2 + $0x8] sm:$0xff]
    %v121 = vld [vmem:[#allocation2 + $0x10] sm:$0xff]
    %v122 = vld [vmem:[#allocation2 + $0x18] sm:$0xff]
    %v123 = vld [vmem:[#allocation2 + $0x20] sm:$0xff]
    %v124 = vld [vmem:[#allocation2 + $0x28] sm:$0xff]
    %v125 = vld [vmem:[#allocation2 + $0x30] sm:$0xff]
    %v126 = vld [vmem:[#allocation2 + $0x38] sm:$0xff]
    %v127 = vld [vmem:[#allocation2 + $0x40] sm:$0xff]
    %v128 = vld [vmem:[#allocation2 + $0x48] sm:$0xff]
    %v129 = vld [vmem:[#allocation2 + $0x50] sm:$0xff]
    %v130 = vld [vmem:[#allocation2 + $0x58] sm:$0xff]
    %v131 = vld [vmem:[#allocation2 + $0x60] sm:$0xff]
    %v132 = vld [vmem:[#allocation2 + $0x68] sm:$0xff]
    %v133 = vld [vmem:[%s4] sm:$0xff]
    %v134 = vld [vmem:[%s4 + $0x8] sm:$0x3f]
    %v135 = vld [vmem:[%s5] sm:$0xff]
    %v136 = vld [vmem:[%s5 + $0x8] sm:$0x3f]
    %v137 = vld [vmem:[%s90] sm:$0xff]
    %v138 = vlaneseq
    %v139 = vand.u32 %v138, 127
    %v140 = vadd.s32 %v139, 128
    %v141 = vadd.s32 %v139, 256
    %v142 = vadd.s32 %v139, 384
    %v143 = vadd.s32 %v139, 512
    %v144 = vadd.s32 %v139, 640
    %v145 = vadd.s32 %v139, 768
    %v146 = vadd.s32 %v139, 896
    %v147 = vadd.s32 %v139, 1024
    %v148 = vadd.s32 %v139, 1152
    %v149 = vadd.s32 %v139, 1280
    %v150 = vadd.s32 %v139, 1408
    %v151 = vadd.s32 %v139, 1536
    %v152 = vadd.s32 %v139, 1664
    %153 = vset.pattern.permute.xlu0 0
    %154 = vperm.xlu0 %153, %v137
    %v155 = vpop.permute.xlu0 %154
    %vm156 = vcmp.eq.s32.totalorder %v139, %v155
    %vm157 = vcmp.eq.s32.totalorder %v140, %v155
    %vm158 = vcmp.eq.s32.totalorder %v141, %v155
    %vm159 = vcmp.eq.s32.totalorder %v142, %v155
    %vm160 = vcmp.eq.s32.totalorder %v143, %v155
    %vm161 = vcmp.eq.s32.totalorder %v144, %v155
    %vm162 = vcmp.eq.s32.totalorder %v145, %v155
    %vm163 = vcmp.eq.s32.totalorder %v146, %v155
    %vm164 = vcmp.eq.s32.totalorder %v147, %v155
    %vm165 = vcmp.eq.s32.totalorder %v148, %v155
    %vm166 = vcmp.eq.s32.totalorder %v149, %v155
    %vm167 = vcmp.eq.s32.totalorder %v150, %v155
    %vm168 = vcmp.eq.s32.totalorder %v151, %v155
    %vm169 = vcmp.eq.s32.totalorder %v152, %v155
    %v170 = vmax.f32 %v119, %v123
    %v171 = vmax.f32 %v120, %v124
    %v172 = vmax.f32 %v121, %v125
    %v173 = vmax.f32 %v122, %v126
    %v174 = vmax.f32 %v170, %v127
    %v175 = vmax.f32 %v171, %v128
    %v176 = vmax.f32 %v172, %v129
    %v177 = vmax.f32 %v173, %v130
    %v178 = vmax.f32 %v174, %v131
    %vm179 = vcmask 982016
    %v180 = vsel %vm179, %v132, -inf
    %v181 = vmax.f32 %v175, %v180
    %v182 = vmax.f32 %v178, %v181
    %v183 = vmax.f32 %v176, %v177
    %v184 = vmax.f32 %v182, %v183
    %185 = vmax.xlane.f32.xlu0 %v184
    %v186 = vpop.xlane.xlu0 %185
    %v187 = vsub.f32 %v119, %v186
    %v188 = vsub.f32 %v120, %v186
    %v189 = vsub.f32 %v121, %v186
    %v190 = vsub.f32 %v122, %v186
    %v191 = vsub.f32 %v123, %v186
    %v192 = vsub.f32 %v124, %v186
    %v193 = vsub.f32 %v125, %v186
    %v194 = vsub.f32 %v126, %v186
    %v195 = vsub.f32 %v127, %v186
    %v196 = vsub.f32 %v128, %v186
    %v197 = vsub.f32 %v129, %v186
    %v198 = vsub.f32 %v130, %v186
    %v199 = vsub.f32 %v131, %v186
    %v200 = vsub.f32 %v132, %v186
    %v201 = vmul.f32 %v187, 1.442695
    %v202 = vpow.pop %v201
    %v203 = vmul.f32 %v188, 1.442695
    %v204 = vpow.pop %v203
    %v205 = vmul.f32 %v189, 1.442695
    %v206 = vpow.pop %v205
    %v207 = vmul.f32 %v190, 1.442695
    %v208 = vpow.pop %v207
    %v209 = vmul.f32 %v191, 1.442695
    %v210 = vpow.pop %v209
    %v211 = vmul.f32 %v192, 1.442695
    %v212 = vpow.pop %v211
    %v213 = vmul.f32 %v193, 1.442695
    %v214 = vpow.pop %v213
    %v215 = vmul.f32 %v194, 1.442695
    %v216 = vpow.pop %v215
    %v217 = vmul.f32 %v195, 1.442695
    %v218 = vpow.pop %v217
    %v219 = vmul.f32 %v196, 1.442695
    %v220 = vpow.pop %v219
    %v221 = vmul.f32 %v197, 1.442695
    %v222 = vpow.pop %v221
    %v223 = vmul.f32 %v198, 1.442695
    %v224 = vpow.pop %v223
    %v225 = vmul.f32 %v199, 1.442695
    %v226 = vpow.pop %v225
    %v227 = vmul.f32 %v200, 1.442695
    %v228 = vpow.pop %v227
    %v229 = vsel %vm156, %v202, 0.0
    %v230 = vsel %vm157, %v204, 0.0
    %v231 = vsel %vm158, %v206, 0.0
    %v232 = vsel %vm159, %v208, 0.0
    %v233 = vsel %vm160, %v210, 0.0
    %v234 = vsel %vm161, %v212, 0.0
    %v235 = vsel %vm162, %v214, 0.0
    %v236 = vsel %vm163, %v216, 0.0
    %v237 = vsel %vm164, %v218, 0.0
    %v238 = vsel %vm165, %v220, 0.0
    %v239 = vsel %vm166, %v222, 0.0
    %v240 = vsel %vm167, %v224, 0.0
    %v241 = vsel %vm168, %v226, 0.0
    %v242 = vsel %vm169, %v228, 0.0
    %v243 = vadd.f32 %v229, %v230
    %v244 = vadd.f32 %v243, %v231
    %v245 = vadd.f32 %v244, %v232
    %v246 = vadd.f32 %v245, %v233
    %v247 = vadd.f32 %v246, %v234
    %v248 = vadd.f32 %v247, %v235
    %v249 = vadd.f32 %v248, %v236
    %v250 = vadd.f32 %v249, %v237
    %v251 = vadd.f32 %v250, %v238
    %v252 = vadd.f32 %v251, %v239
    %v253 = vadd.f32 %v252, %v240
    %v254 = vadd.f32 %v253, %v241
    %v255 = vsel %vm179, %v242, 0.0
    %v256 = vadd.f32 %v254, %v255
    %257 = vadd.xlane.f32.xlu0 %v256
    %v258 = vpop.xlane.xlu0 %257
    %v261 = vperm.slane %v133, 0
    %v262 = vperm.slane %v133, 1
    %v263 = vperm.slane %v133, 2
    %v264 = vperm.slane %v133, 3
    %v265 = vperm.slane %v133, 4
    %v266 = vperm.slane %v133, 5
    %v267 = vperm.slane %v133, 6
    %v268 = vperm.slane %v133, 7
    %v269 = vperm.slane %v134, 0
    %v270 = vperm.slane %v134, 1
    %v271 = vperm.slane %v134, 2
    %v272 = vperm.slane %v134, 3
    %v273 = vperm.slane %v134, 4
    %v274 = vperm.slane %v134, 5
    %v289 = vsel %vm156, %v261, 0.0
    %v290 = vsel %vm157, %v262, 0.0
    %v291 = vsel %vm158, %v263, 0.0
    %v292 = vsel %vm159, %v264, 0.0
    %v293 = vsel %vm160, %v265, 0.0
    %v294 = vsel %vm161, %v266, 0.0
    %v295 = vsel %vm162, %v267, 0.0
    %v296 = vsel %vm163, %v268, 0.0
    %v297 = vsel %vm164, %v269, 0.0
    %v298 = vsel %vm165, %v270, 0.0
    %v299 = vsel %vm166, %v271, 0.0
    %v300 = vsel %vm167, %v272, 0.0
    %v301 = vsel %vm168, %v273, 0.0
    %v302 = vsel %vm169, %v274, 0.0
    %v303 = vadd.f32 %v289, %v290
    %v304 = vadd.f32 %v303, %v291
    %v305 = vadd.f32 %v304, %v292
    %v306 = vadd.f32 %v305, %v293
    %v307 = vadd.f32 %v306, %v294
    %v308 = vadd.f32 %v307, %v295
    %v309 = vadd.f32 %v308, %v296
    %v310 = vadd.f32 %v309, %v297
    %v311 = vadd.f32 %v310, %v298
    %v312 = vadd.f32 %v311, %v299
    %v313 = vadd.f32 %v312, %v300
    %v314 = vadd.f32 %v313, %v301
    %v315 = vsel %vm179, %v302, 0.0
    %v316 = vadd.f32 %v314, %v315
    %317 = vadd.xlane.f32.xlu0 %v316
    %v318 = vpop.xlane.xlu0 %317
    %v321 = vperm.slane %v135, 0
    %v322 = vperm.slane %v135, 1
    %v323 = vperm.slane %v135, 2
    %v324 = vperm.slane %v135, 3
    %v325 = vperm.slane %v135, 4
    %v326 = vperm.slane %v135, 5
    %v327 = vperm.slane %v135, 6
    %v328 = vperm.slane %v135, 7
    %v329 = vperm.slane %v136, 0
    %v330 = vperm.slane %v136, 1
    %v331 = vperm.slane %v136, 2
    %v332 = vperm.slane %v136, 3
    %v333 = vperm.slane %v136, 4
    %v334 = vperm.slane %v136, 5
    %v349 = vsel %vm156, %v321, 0.0
    %v350 = vsel %vm157, %v322, 0.0
    %v351 = vsel %vm158, %v323, 0.0
    %v352 = vsel %vm159, %v324, 0.0
    %v353 = vsel %vm160, %v325, 0.0
    %v354 = vsel %vm161, %v326, 0.0
    %v355 = vsel %vm162, %v327, 0.0
    %v356 = vsel %vm163, %v328, 0.0
    %v357 = vsel %vm164, %v329, 0.0
    %v358 = vsel %vm165, %v330, 0.0
    %v359 = vsel %vm166, %v331, 0.0
    %v360 = vsel %vm167, %v332, 0.0
    %v361 = vsel %vm168, %v333, 0.0
    %v362 = vsel %vm169, %v334, 0.0
    %v363 = vadd.f32 %v349, %v350
    %v364 = vadd.f32 %v363, %v351
    %v365 = vadd.f32 %v364, %v352
    %v366 = vadd.f32 %v365, %v353
    %v367 = vadd.f32 %v366, %v354
    %v368 = vadd.f32 %v367, %v355
    %v369 = vadd.f32 %v368, %v356
    %v370 = vadd.f32 %v369, %v357
    %v371 = vadd.f32 %v370, %v358
    %v372 = vadd.f32 %v371, %v359
    %v373 = vadd.f32 %v372, %v360
    %v374 = vadd.f32 %v373, %v361
    %v375 = vsel %vm179, %v362, 0.0
    %v376 = vadd.f32 %v374, %v375
    %377 = vadd.xlane.f32.xlu0 %v376
    %v378 = vpop.xlane.xlu0 %377
    %v379 = vrcp.pop %v378
    %v380 = vmul.f32 %v378, %v379
    %v381 = vsub.f32 1.0, %v380
    %v382 = vmul.f32 %v379, %v381
    %v383 = vadd.f32 %v379, %v382
    %vm384 = vweird.f32 %v378
    %vm385 = vweird.f32 %v379
    %vm386 = vmor %vm384, %vm385
    %v387 = vsel %vm386, %v379, %v383
    %v388 = vand.u32 2147483647, %v378
    %vm389 = vcmp.eq.f32.partialorder %v388, 8.507059e+37
    %v390 = vand.u32 %v378, 2147483648
    %v391 = vor.u32 1.1754944e-38, %v390
    %v392 = vsel %vm389, %v391, %v387
    %v393 = vmul.f32 1.0, %v392
    %v394 = vmul.f32 %v321, %v393
    %v395 = vmul.f32 %v322, %v393
    %v396 = vmul.f32 %v323, %v393
    %v397 = vmul.f32 %v324, %v393
    %v398 = vmul.f32 %v325, %v393
    %v399 = vmul.f32 %v326, %v393
    %v400 = vmul.f32 %v327, %v393
    %v401 = vmul.f32 %v328, %v393
    %v402 = vmul.f32 %v329, %v393
    %v403 = vmul.f32 %v330, %v393
    %v404 = vmul.f32 %v331, %v393
    %v405 = vmul.f32 %v332, %v393
    %v406 = vmul.f32 %v333, %v393
    %v407 = vmul.f32 %v334, %v393
    %vm408 = vcmp.gt.f32.partialorder %v318, %v261
    %vm409 = vcmp.gt.f32.partialorder %v318, %v262
    %vm410 = vcmp.gt.f32.partialorder %v318, %v263
    %vm411 = vcmp.gt.f32.partialorder %v318, %v264
    %vm412 = vcmp.gt.f32.partialorder %v318, %v265
    %vm413 = vcmp.gt.f32.partialorder %v318, %v266
    %vm414 = vcmp.gt.f32.partialorder %v318, %v267
    %vm415 = vcmp.gt.f32.partialorder %v318, %v268
    %vm416 = vcmp.gt.f32.partialorder %v318, %v269
    %vm417 = vcmp.gt.f32.partialorder %v318, %v270
    %vm418 = vcmp.gt.f32.partialorder %v318, %v271
    %vm419 = vcmp.gt.f32.partialorder %v318, %v272
    %vm420 = vcmp.gt.f32.partialorder %v318, %v273
    %vm421 = vcmp.gt.f32.partialorder %v318, %v274
    %v422 = vmul.f32 %v394, %v202
    %v423 = vmul.f32 %v395, %v204
    %v424 = vmul.f32 %v396, %v206
    %v425 = vmul.f32 %v397, %v208
    %v426 = vmul.f32 %v398, %v210
    %v427 = vmul.f32 %v399, %v212
    %v428 = vmul.f32 %v400, %v214
    %v429 = vmul.f32 %v401, %v216
    %v430 = vmul.f32 %v402, %v218
    %v431 = vmul.f32 %v403, %v220
    %v432 = vmul.f32 %v404, %v222
    %v433 = vmul.f32 %v405, %v224
    %v434 = vmul.f32 %v406, %v226
    %v435 = vmul.f32 %v407, %v228
    %v436 = vsel %vm408, %v422, %v202
    %v437 = vsel %vm409, %v423, %v204
    %v438 = vsel %vm410, %v424, %v206
    %v439 = vsel %vm411, %v425, %v208
    %v440 = vsel %vm412, %v426, %v210
    %v441 = vsel %vm413, %v427, %v212
    %v442 = vsel %vm414, %v428, %v214
    %v443 = vsel %vm415, %v429, %v216
    %v444 = vsel %vm416, %v430, %v218
    %v445 = vsel %vm417, %v431, %v220
    %v446 = vsel %vm418, %v432, %v222
    %v447 = vsel %vm419, %v433, %v224
    %v448 = vsel %vm420, %v434, %v226
    %v449 = vsel %vm421, %v435, %v228
    %v450 = vadd.f32 %v436, %v437
    %v451 = vadd.f32 %v450, %v438
    %v452 = vadd.f32 %v451, %v439
    %v453 = vadd.f32 %v452, %v440
    %v454 = vadd.f32 %v453, %v441
    %v455 = vadd.f32 %v454, %v442
    %v456 = vadd.f32 %v455, %v443
    %v457 = vadd.f32 %v456, %v444
    %v458 = vadd.f32 %v457, %v445
    %v459 = vadd.f32 %v458, %v446
    %v460 = vadd.f32 %v459, %v447
    %v461 = vadd.f32 %v460, %v448
    %v462 = vsel %vm179, %v449, 0.0
    %v463 = vadd.f32 %v461, %v462
    %464 = vadd.xlane.f32.xlu0 %v463
    %v465 = vpop.xlane.xlu0 %464
    %v466 = vadd.f32 %v465, 1e-06
    %v467 = vrcp.pop %v466
    %v468 = vmul.f32 %v466, %v467
    %v469 = vsub.f32 1.0, %v468
    %v470 = vmul.f32 %v467, %v469
    %v471 = vadd.f32 %v467, %v470
    %vm472 = vweird.f32 %v466
    %vm473 = vweird.f32 %v467
    %vm474 = vmor %vm472, %vm473
    %v475 = vsel %vm474, %v467, %v471
    %v476 = vand.u32 2147483647, %v466
    %vm477 = vcmp.eq.f32.partialorder %v476, 8.507059e+37
    %v478 = vand.u32 %v466, 2147483648
    %v479 = vor.u32 1.1754944e-38, %v478
    %v480 = vsel %vm477, %v479, %v475
    %v481 = vmul.f32 %v258, %v480
    %v482 = vadd.f32 %v481, 1e-06
    %v483 = vlog2.pop %v482
    %v484 = vmul.f32 %v483, 0.6931472
    %v485 = vsub.f32 0.0, %v484
    %v486 = vadd.f32 %v118, %v485
    %v487 = vsel %vm104, %v486, 0.0
    %vm488 = vcmask 7168
    %v489 = vsel %vm488, %v487, 0.0
    %v490 = vrot.slane %v489, 4
    %v491 = vadd.f32 %v489, %v490
    %v492 = vrot.slane %v491, 2
    %v493 = vadd.f32 %v491, %v492
    %v494 = vrot.slane %v493, 1
    %v495 = vadd.f32 %v493, %v494
    %v496 = vld [vmem:[%s6] sm:$0x1]
    %498 = vset.pattern.permute.xlu0 0
    %499 = vperm.xlu0 %498, %v495
    %v500 = vpop.permute.xlu0 %499
    %v502 = vadd.f32 %v496, %v500
    %503 = vst [vmem:[%s6] sm:$0x1] %v502
    // Predicated region
    $region34: #{combined_loss.1} parent=1 // pred_check
      _
    $region35: #{combined_loss.1} parent=1 // pred_check_branch
      %505 = sbr.rel (0) target = $region37
    $region36: #{combined_loss.1} parent=1 // pred_region
      _
    $region37: #{combined_loss.1} parent=1 // pred_fallthru
      _
    // Predicated region
    $region38: #{combined_loss.1} parent=1 // pred_check
      _
    $region39: #{combined_loss.1} parent=1 // pred_check_branch
      %507 = sbr.rel (0) target = $region41
    $region40: #{combined_loss.1} parent=1 // pred_region
      _
    $region41: #{combined_loss.1} parent=1 // pred_fallthru
      _
    %508 = vsyncpa [#allocation3], 1

</llo_original>
